<compile_context>
chip_gen: v6e
topology: v6e:2x2x1
jax: 0.10.0
libtpu: 0.0.40
codegen_flags: <defaults>
</compile_context>

<pallas_src>
import functools

import jax
import jax.numpy as jnp
from jax.experimental import pallas as pl
from jax.experimental.pallas import tpu as pltpu

SUBLANE = 16   # batch-tile granularity: legal for both f32 (8) and bf16 (16) sublanes


def _round_up(x, m):
    return ((x + m - 1) // m) * m


# -----------------------------------------------------------------------------
# Pallas kernel: the whole MLP (encoder [+ projector]) fused; one batch tile per
# grid step.  Weights/biases use constant index maps -> DMA'd once, VMEM-resident.
# -----------------------------------------------------------------------------
def _mlp_kernel(*refs, n_layers, relu_before):
    # refs = (x_ref, w0, b0, w1, b1, ..., w{L-1}, b{L-1}, o_ref)
    x_ref = refs[0]
    o_ref = refs[-1]
    wb = refs[1:-1]
    assert len(wb) == 2 * n_layers

    h = x_ref[...].astype(jnp.float32)                    # (TB, in_dim) f32
    for i in range(n_layers):
        if relu_before[i]:
            h = jnp.maximum(h, 0.0)                        # ReLU on f32 accumulator
        w = wb[2 * i][...]                                 # (in_i, out_i) param dtype
        b = wb[2 * i + 1][...].astype(jnp.float32)         # (1, out_i) f32
        if i == 0:
            # First layer in f32: raw tabular inputs, tiny K -> f32 is free.
            h = jnp.dot(h, w.astype(jnp.float32),
                        preferred_element_type=jnp.float32) + b
        else:
            h = jnp.dot(h.astype(w.dtype), w,
                        preferred_element_type=jnp.float32) + b
    o_ref[...] = h.astype(o_ref.dtype)


# -----------------------------------------------------------------------------
# One-time parameter preparation (cast / reshape) — do NOT redo this per forward.
# -----------------------------------------------------------------------------
def prepare_params(weights, biases, param_dtype=jnp.float32):
    """Casts weights to `param_dtype` and biases to (1, out) f32, once."""
    wps = [jnp.asarray(w, param_dtype) for w in weights]
    bps = [jnp.asarray(b, jnp.float32).reshape(1, -1) for b in biases]
    return wps, bps


def _vmem_capacity_bytes():
    try:
        return int(pltpu.get_tpu_info().vmem_capacity_bytes)
    except Exception:
        return 64 << 20   # conservative fallback (v7x per-TC VMEM)


# -----------------------------------------------------------------------------
# Forward: fused MLP over a 1-D "parallel" batch grid.
# -----------------------------------------------------------------------------
def tabular_embedding_forward(x, wps, bps, relu_before, *,
                              block_batch=1024,
                              out_dtype=jnp.bfloat16):
    """Fused MLP forward.

    Args:
      x:            (batch, input_size) array (streamed at its true lane width).
      wps, bps:     output of `prepare_params` (weights (in,out), biases (1,out)).
      relu_before:  per-layer bool — apply ReLU to that layer's input.
      block_batch:  batch-tile rows (auto-shrunk if it would not fit VMEM).
      out_dtype:    output dtype (accumulation is always f32).
    """
    batch, in_dim = x.shape
    n_layers = len(wps)
    assert wps[0].shape[0] == in_dim
    out_dim = wps[-1].shape[1]
    dims = [in_dim] + [w.shape[1] for w in wps]

    x_el = jnp.dtype(x.dtype).itemsize
    o_el = jnp.dtype(out_dtype).itemsize

    resident = (sum(w.size * w.dtype.itemsize for w in wps)
                + sum(b.size * b.dtype.itemsize for b in bps))
    vmem_cap = _vmem_capacity_bytes()
    if 2 * resident > int(0.6 * vmem_cap):
        # TODO(synk): K/N-tiled weight grid fallback for very large embedding dims.
        raise ValueError(
            f"resident parameters ({resident} B, double-buffered) do not fit the "
            f"{vmem_cap >> 20} MiB VMEM of this TPU generation")

    # ---- batch tiling (multiple of 16 so f32 and bf16 blocks are both legal) ----
    tb = _round_up(min(block_batch, _round_up(batch, SUBLANE)), SUBLANE)

    def need_bytes(tb_):
        io = tb_ * in_dim * x_el + tb_ * out_dim * o_el      # one x tile + one out tile
        act = 2 * tb_ * max(dims) * 4                        # f32 intermediates headroom
        return 2 * io + 2 * resident + act                   # double-buffered blocks

    while need_bytes(tb) + (8 << 20) > int(0.7 * vmem_cap) and tb > SUBLANE:
        tb = _round_up(tb // 2, SUBLANE)

    pbatch = _round_up(batch, tb)
    n_blocks = pbatch // tb

    xp = x
    if pbatch != batch:
        xp = jnp.zeros((pbatch, in_dim), x.dtype).at[:batch].set(x)

    # ---- specs -----------------------------------------------------------------
    operands = [xp]
    in_specs = [pl.BlockSpec((tb, in_dim), lambda i: (i, 0))]
    for li in range(n_layers):
        operands += [wps[li], bps[li]]
        # Full-array blocks, constant index map: params DMA'd once, VMEM-resident.
        in_specs += [
            pl.BlockSpec(wps[li].shape, lambda i: (0, 0)),
            pl.BlockSpec(bps[li].shape, lambda i: (0, 0)),
        ]
    out_spec = pl.BlockSpec((tb, out_dim), lambda i: (i, 0))

    # ---- VMEM budget (need + headroom, generation-aware cap) & cost hint --------
    vmem_limit = int(min(need_bytes(tb) + (8 << 20), int(0.7 * vmem_cap)))

    flops = 2 * pbatch * sum(dims[i] * dims[i + 1] for i in range(n_layers))
    bytes_accessed = int(xp.size * x_el + resident + pbatch * out_dim * o_el)

    kernel = functools.partial(_mlp_kernel, n_layers=n_layers,
                               relu_before=tuple(bool(r) for r in relu_before))

    out = pl.pallas_call(
        kernel,
        out_shape=jax.ShapeDtypeStruct((pbatch, out_dim), out_dtype),
        grid=(n_blocks,),
        in_specs=in_specs,
        out_specs=out_spec,
        compiler_params=pltpu.CompilerParams(
            dimension_semantics=("parallel",),
            vmem_limit_bytes=vmem_limit,
        ),
        cost_estimate=pl.CostEstimate(
            flops=flops, transcendentals=0, bytes_accessed=bytes_accessed),
    )(*operands)

    if pbatch != batch:
        out = out[:batch]          # only a copy when batch padding was added
    return out


# -----------------------------------------------------------------------------
# Parameter construction (deterministic; mirrors the PyTorch module's topology).
# TODO(synk): torch.load checkpoint / state_dict restore has no in-script
# equivalent — parameters are synthesized with the same layer shapes instead.
# -----------------------------------------------------------------------------
def build_params(key, input_size, embedding_dim, projection_dim,
                 encoder_num_layers, projector_num_layers, keep_projector):
    """Returns (weights, biases, relu_before) matching the PyTorch module.

    Encoder:   Linear(in, emb), then (ReLU, Linear(emb, emb)) * (enc_layers - 1)
    Projector: ReLU, Linear(emb, proj), then (ReLU, Linear(proj, proj)) * (proj_layers - 1)
    """
    layer_dims = []      # (in, out) per Linear
    relu_before = []     # ReLU applied to this Linear's input?

    layer_dims.append((input_size, embedding_dim))
    relu_before.append(False)
    for _ in range(encoder_num_layers - 1):
        layer_dims.append((embedding_dim, embedding_dim))
        relu_before.append(True)

    if keep_projector:
        layer_dims.append((embedding_dim, projection_dim))
        relu_before.append(True)
        for _ in range(projector_num_layers - 1):
            layer_dims.append((projection_dim, projection_dim))
            relu_before.append(True)

    weights, biases = [], []
    for (d_in, d_out) in layer_dims:
        key, kw, kb = jax.random.split(key, 3)
        # weight stored pre-transposed as (in, out); y = x @ W + b
        w = jax.random.normal(kw, (d_in, d_out), jnp.float32) * (1.0 / jnp.sqrt(d_in))
        b = jax.random.normal(kb, (d_out,), jnp.float32) * 0.01
        weights.append(w)
        biases.append(b)
    return weights, biases, relu_before


def reference_forward(x, weights, biases, relu_before):
    h = x
    for w, b, pre_relu in zip(weights, biases, relu_before):
        if pre_relu:
            h = jnp.maximum(h, 0.0)
        h = h @ w + b
    return h


if __name__ == "__main__":
    # Small synthetic config consistent with the module's hyper-parameters.
    input_size = 16
    embedding_dim = 32
    projection_dim = 32
    encoder_num_layers = 2
    projector_num_layers = 2
    keep_projector = True
    batch = 200               # deliberately not a multiple of the tile / sublane

    key = jax.random.PRNGKey(0)
    key, kx = jax.random.split(key)
    x = jax.random.normal(kx, (batch, input_size), jnp.float32)

    weights, biases, relu_before = build_params(
        key, input_size, embedding_dim, projection_dim,
        encoder_num_layers, projector_num_layers, keep_projector)

    ref = reference_forward(x, weights, biases, relu_before)
    expected_dim = projection_dim if keep_projector else embedding_dim

    # --- f32 params + f32 output: near-exact check of kernel math / tiling -----
    wps32, bps32 = prepare_params(weights, biases, param_dtype=jnp.float32)
    out_f32 = tabular_embedding_forward(
        x, wps32, bps32, relu_before, out_dtype=jnp.float32)
    out_f32 = jax.block_until_ready(out_f32)
    assert out_f32.shape == (batch, expected_dim)
    assert jnp.allclose(out_f32, ref, atol=1e-3, rtol=1e-3)

    # --- bf16 params + bf16 output (fast path): loose check against reference --
    wps16, bps16 = prepare_params(weights, biases, param_dtype=jnp.bfloat16)
    out_bf16 = tabular_embedding_forward(x, wps16, bps16, relu_before)
    out_bf16 = jax.block_until_ready(out_bf16)
    assert out_bf16.shape == (batch, expected_dim)
    assert jnp.allclose(out_bf16.astype(jnp.float32), ref, atol=1e-1, rtol=1e-1)

    print("KERNEL_OK")
</pallas_src>

<mosaic_0001>
module attributes {stable_mosaic.version = 11 : i64} {
  func.func @_mlp_kernel(%arg0: i32, %arg1: memref<208x16xf32, #tpu.memory_space<vmem>>, %arg2: memref<16x32xf32, #tpu.memory_space<vmem>>, %arg3: memref<1x32xf32, #tpu.memory_space<vmem>>, %arg4: memref<32x32xf32, #tpu.memory_space<vmem>>, %arg5: memref<1x32xf32, #tpu.memory_space<vmem>>, %arg6: memref<32x32xf32, #tpu.memory_space<vmem>>, %arg7: memref<1x32xf32, #tpu.memory_space<vmem>>, %arg8: memref<32x32xf32, #tpu.memory_space<vmem>>, %arg9: memref<1x32xf32, #tpu.memory_space<vmem>>, %arg10: memref<208x32xf32, #tpu.memory_space<vmem>>) attributes {dimension_semantics = [#tpu.dimension_semantics<parallel>], iteration_bounds = array<i64: 1>, scalar_prefetch = 0 : i64, scratch_operands = 0 : i64, tpu.core_type = #tpu.core_type<tc>, window_params = [{transform_indices = @transform_0, window_bounds = array<i64: 208, 16>}, {pipeline_mode = #tpu.pipeline_mode<synchronous>, transform_indices = @transform_1, window_bounds = array<i64: 16, 32>}, {pipeline_mode = #tpu.pipeline_mode<synchronous>, transform_indices = @transform_2, window_bounds = array<i64: 1, 32>}, {pipeline_mode = #tpu.pipeline_mode<synchronous>, transform_indices = @transform_3, window_bounds = array<i64: 32, 32>}, {pipeline_mode = #tpu.pipeline_mode<synchronous>, transform_indices = @transform_4, window_bounds = array<i64: 1, 32>}, {pipeline_mode = #tpu.pipeline_mode<synchronous>, transform_indices = @transform_5, window_bounds = array<i64: 32, 32>}, {pipeline_mode = #tpu.pipeline_mode<synchronous>, transform_indices = @transform_6, window_bounds = array<i64: 1, 32>}, {pipeline_mode = #tpu.pipeline_mode<synchronous>, transform_indices = @transform_7, window_bounds = array<i64: 32, 32>}, {pipeline_mode = #tpu.pipeline_mode<synchronous>, transform_indices = @transform_8, window_bounds = array<i64: 1, 32>}, {transform_indices = @transform_9, window_bounds = array<i64: 208, 32>}]} {
    %c0 = arith.constant 0 : index
    %c0_0 = arith.constant 0 : index
    %0 = vector.load %arg1[%c0, %c0_0] : memref<208x16xf32, #tpu.memory_space<vmem>>, vector<208x16xf32>
    %c0_1 = arith.constant 0 : index
    %c0_2 = arith.constant 0 : index
    %1 = vector.load %arg2[%c0_1, %c0_2] : memref<16x32xf32, #tpu.memory_space<vmem>>, vector<16x32xf32>
    %c0_3 = arith.constant 0 : index
    %c0_4 = arith.constant 0 : index
    %2 = vector.load %arg3[%c0_3, %c0_4] : memref<1x32xf32, #tpu.memory_space<vmem>>, vector<1x32xf32>
    %cst = arith.constant dense<0.000000e+00> : vector<208x32xf32>
    %3 = tpu.matmul %0, %1, %cst {dimension_numbers = #tpu.dot_dimension_numbers<[1], [0], [0], [1], [0, 0, 1, 1], [], []>} : vector<208x16xf32>, vector<16x32xf32>, vector<208x32xf32> -> vector<208x32xf32>
    %4 = vector.broadcast %2 : vector<1x32xf32> to vector<208x32xf32>
    %5 = arith.addf %3, %4 : vector<208x32xf32>
    %cst_5 = arith.constant 0.000000e+00 : f32
    %6 = vector.broadcast %cst_5 : f32 to vector<208x32xf32>
    %7 = arith.maximumf %5, %6 : vector<208x32xf32>
    %c0_6 = arith.constant 0 : index
    %c0_7 = arith.constant 0 : index
    %8 = vector.load %arg4[%c0_6, %c0_7] : memref<32x32xf32, #tpu.memory_space<vmem>>, vector<32x32xf32>
    %c0_8 = arith.constant 0 : index
    %c0_9 = arith.constant 0 : index
    %9 = vector.load %arg5[%c0_8, %c0_9] : memref<1x32xf32, #tpu.memory_space<vmem>>, vector<1x32xf32>
    %cst_10 = arith.constant dense<0.000000e+00> : vector<208x32xf32>
    %10 = tpu.matmul %7, %8, %cst_10 {dimension_numbers = #tpu.dot_dimension_numbers<[1], [0], [0], [1], [0, 0, 1, 1], [], []>} : vector<208x32xf32>, vector<32x32xf32>, vector<208x32xf32> -> vector<208x32xf32>
    %11 = vector.broadcast %9 : vector<1x32xf32> to vector<208x32xf32>
    %12 = arith.addf %10, %11 : vector<208x32xf32>
    %cst_11 = arith.constant 0.000000e+00 : f32
    %13 = vector.broadcast %cst_11 : f32 to vector<208x32xf32>
    %14 = arith.maximumf %12, %13 : vector<208x32xf32>
    %c0_12 = arith.constant 0 : index
    %c0_13 = arith.constant 0 : index
    %15 = vector.load %arg6[%c0_12, %c0_13] : memref<32x32xf32, #tpu.memory_space<vmem>>, vector<32x32xf32>
    %c0_14 = arith.constant 0 : index
    %c0_15 = arith.constant 0 : index
    %16 = vector.load %arg7[%c0_14, %c0_15] : memref<1x32xf32, #tpu.memory_space<vmem>>, vector<1x32xf32>
    %cst_16 = arith.constant dense<0.000000e+00> : vector<208x32xf32>
    %17 = tpu.matmul %14, %15, %cst_16 {dimension_numbers = #tpu.dot_dimension_numbers<[1], [0], [0], [1], [0, 0, 1, 1], [], []>} : vector<208x32xf32>, vector<32x32xf32>, vector<208x32xf32> -> vector<208x32xf32>
    %18 = vector.broadcast %16 : vector<1x32xf32> to vector<208x32xf32>
    %19 = arith.addf %17, %18 : vector<208x32xf32>
    %cst_17 = arith.constant 0.000000e+00 : f32
    %20 = vector.broadcast %cst_17 : f32 to vector<208x32xf32>
    %21 = arith.maximumf %19, %20 : vector<208x32xf32>
    %c0_18 = arith.constant 0 : index
    %c0_19 = arith.constant 0 : index
    %22 = vector.load %arg8[%c0_18, %c0_19] : memref<32x32xf32, #tpu.memory_space<vmem>>, vector<32x32xf32>
    %c0_20 = arith.constant 0 : index
    %c0_21 = arith.constant 0 : index
    %23 = vector.load %arg9[%c0_20, %c0_21] : memref<1x32xf32, #tpu.memory_space<vmem>>, vector<1x32xf32>
    %cst_22 = arith.constant dense<0.000000e+00> : vector<208x32xf32>
    %24 = tpu.matmul %21, %22, %cst_22 {dimension_numbers = #tpu.dot_dimension_numbers<[1], [0], [0], [1], [0, 0, 1, 1], [], []>} : vector<208x32xf32>, vector<32x32xf32>, vector<208x32xf32> -> vector<208x32xf32>
    %25 = vector.broadcast %23 : vector<1x32xf32> to vector<208x32xf32>
    %26 = arith.addf %24, %25 : vector<208x32xf32>
    %c0_23 = arith.constant 0 : index
    %c0_24 = arith.constant 0 : index
    %27 = vector.load %arg10[%c0_23, %c0_24] : memref<208x32xf32, #tpu.memory_space<vmem>>, vector<208x32xf32>
    tpu.vector_store %arg10[%c0_23, %c0_24], %26 {strides = array<i32>} : memref<208x32xf32, #tpu.memory_space<vmem>>, vector<208x32xf32>,
    return
  }
  func.func @transform_0(%arg0: i32) -> (i32, i32) {
    %c0_i32 = arith.constant 0 : i32
    %c0_i32_0 = arith.constant 0 : i32
    return %arg0, %c0_i32 : i32, i32
  }
  func.func @transform_1(%arg0: i32) -> (i32, i32) {
    %c0_i32 = arith.constant 0 : i32
    %c0_i32_0 = arith.constant 0 : i32
    %c0_i32_1 = arith.constant 0 : i32
    return %c0_i32, %c0_i32_0 : i32, i32
  }
  func.func @transform_2(%arg0: i32) -> (i32, i32) {
    %c0_i32 = arith.constant 0 : i32
    %c0_i32_0 = arith.constant 0 : i32
    %c0_i32_1 = arith.constant 0 : i32
    return %c0_i32, %c0_i32_0 : i32, i32
  }
  func.func @transform_3(%arg0: i32) -> (i32, i32) {
    %c0_i32 = arith.constant 0 : i32
    %c0_i32_0 = arith.constant 0 : i32
    %c0_i32_1 = arith.constant 0 : i32
    return %c0_i32, %c0_i32_0 : i32, i32
  }
  func.func @transform_4(%arg0: i32) -> (i32, i32) {
    %c0_i32 = arith.constant 0 : i32
    %c0_i32_0 = arith.constant 0 : i32
    %c0_i32_1 = arith.constant 0 : i32
    return %c0_i32, %c0_i32_0 : i32, i32
  }
  func.func @transform_5(%arg0: i32) -> (i32, i32) {
    %c0_i32 = arith.constant 0 : i32
    %c0_i32_0 = arith.constant 0 : i32
    %c0_i32_1 = arith.constant 0 : i32
    return %c0_i32, %c0_i32_0 : i32, i32
  }
  func.func @transform_6(%arg0: i32) -> (i32, i32) {
    %c0_i32 = arith.constant 0 : i32
    %c0_i32_0 = arith.constant 0 : i32
    %c0_i32_1 = arith.constant 0 : i32
    return %c0_i32, %c0_i32_0 : i32, i32
  }
  func.func @transform_7(%arg0: i32) -> (i32, i32) {
    %c0_i32 = arith.constant 0 : i32
    %c0_i32_0 = arith.constant 0 : i32
    %c0_i32_1 = arith.constant 0 : i32
    return %c0_i32, %c0_i32_0 : i32, i32
  }
  func.func @transform_8(%arg0: i32) -> (i32, i32) {
    %c0_i32 = arith.constant 0 : i32
    %c0_i32_0 = arith.constant 0 : i32
    %c0_i32_1 = arith.constant 0 : i32
    return %c0_i32, %c0_i32_0 : i32, i32
  }
  func.func @transform_9(%arg0: i32) -> (i32, i32) {
    %c0_i32 = arith.constant 0 : i32
    %c0_i32_0 = arith.constant 0 : i32
    return %arg0, %c0_i32 : i32, i32
  }
}

</mosaic_0001>

<llo_original>
// kernel: tpu_custom_call.1
$region0: #{tpu_custom_call.1}
  #allocation0 [shape = 'u32[]', space=smem, size = 0x4, offset = 0x4, fixed_abs, tag = 'smem constant byte address 0x4 - core index']
  #allocation1 [shape = 'u32[144,128]{1,0:T(1,128)}', space=vmem, size = 0x12000, scoped, tag = 'internal scratch']
  %s0 = inlined_call_operand.vmem [shape: f32[208,16], index: 0, kind: input, shape index: {}]
  %s1 = inlined_call_operand.vmem [shape: f32[16,32], index: 1, kind: input, shape index: {}]
  %s2 = inlined_call_operand.vmem [shape: f32[1,32], index: 2, kind: input, shape index: {}]
  %s3 = inlined_call_operand.vmem [shape: f32[32,32], index: 3, kind: input, shape index: {}]
  %s4 = inlined_call_operand.vmem [shape: f32[1,32], index: 4, kind: input, shape index: {}]
  %s5 = inlined_call_operand.vmem [shape: f32[32,32], index: 5, kind: input, shape index: {}]
  %s6 = inlined_call_operand.vmem [shape: f32[1,32], index: 6, kind: input, shape index: {}]
  %s7 = inlined_call_operand.vmem [shape: f32[32,32], index: 7, kind: input, shape index: {}]
  %s8 = inlined_call_operand.vmem [shape: f32[1,32], index: 8, kind: input, shape index: {}]
  %s9 = inlined_call_operand.vmem [shape: f32[208,32], index: 9, kind: output, shape index: {}]
  %s10 = sld [smem:[#allocation0]]
  $region46: #{tpu_custom_call.1} parent=0
    _
  %s12 = ssub.s32 1, %s10
  %s13 = scalar_select 0, %s12, %s10
  // Predicated region
  $region2: #{tpu_custom_call.1} parent=0 // pred_check
    _
  $region3: #{tpu_custom_call.1} parent=0 // pred_check_branch
    %15 = sbr.rel (0) target = $region5
  $region4: #{tpu_custom_call.1} parent=0 // pred_region
    _
  $region5: #{tpu_custom_call.1} parent=0 // pred_fallthru
    _
  // Predicated region
  $region6: #{tpu_custom_call.1} parent=0 // pred_check
    _
  $region7: #{tpu_custom_call.1} parent=0 // pred_check_branch
    %17 = sbr.rel (0) target = $region9
  $region8: #{tpu_custom_call.1} parent=0 // pred_region
    _
  $region9: #{tpu_custom_call.1} parent=0 // pred_fallthru
    _
  // Predicated region
  $region10: #{tpu_custom_call.1} parent=0 // pred_check
    _
  $region11: #{tpu_custom_call.1} parent=0 // pred_check_branch
    %19 = sbr.rel (0) target = $region13
  $region12: #{tpu_custom_call.1} parent=0 // pred_region
    _
  $region13: #{tpu_custom_call.1} parent=0 // pred_fallthru
    _
  // Predicated region
  $region14: #{tpu_custom_call.1} parent=0 // pred_check
    _
  $region15: #{tpu_custom_call.1} parent=0 // pred_check_branch
    %21 = sbr.rel (0) target = $region17
  $region16: #{tpu_custom_call.1} parent=0 // pred_region
    _
  $region17: #{tpu_custom_call.1} parent=0 // pred_fallthru
    _
  // Predicated region
  $region18: #{tpu_custom_call.1} parent=0 // pred_check
    _
  $region19: #{tpu_custom_call.1} parent=0 // pred_check_branch
    %23 = sbr.rel (0) target = $region21
  $region20: #{tpu_custom_call.1} parent=0 // pred_region
    _
  $region21: #{tpu_custom_call.1} parent=0 // pred_fallthru
    _
  // Predicated region
  $region22: #{tpu_custom_call.1} parent=0 // pred_check
    _
  $region23: #{tpu_custom_call.1} parent=0 // pred_check_branch
    %25 = sbr.rel (0) target = $region25
  $region24: #{tpu_custom_call.1} parent=0 // pred_region
    _
  $region25: #{tpu_custom_call.1} parent=0 // pred_fallthru
    _
  // Predicated region
  $region26: #{tpu_custom_call.1} parent=0 // pred_check
    _
  $region27: #{tpu_custom_call.1} parent=0 // pred_check_branch
    %27 = sbr.rel (0) target = $region29
  $region28: #{tpu_custom_call.1} parent=0 // pred_region
    _
  $region29: #{tpu_custom_call.1} parent=0 // pred_fallthru
    _
  // Predicated region
  $region30: #{tpu_custom_call.1} parent=0 // pred_check
    _
  $region31: #{tpu_custom_call.1} parent=0 // pred_check_branch
    %29 = sbr.rel (0) target = $region33
  $region32: #{tpu_custom_call.1} parent=0 // pred_region
    _
  $region33: #{tpu_custom_call.1} parent=0 // pred_fallthru
    _
  // Predicated region
  $region34: #{tpu_custom_call.1} parent=0 // pred_check
    _
  $region35: #{tpu_custom_call.1} parent=0 // pred_check_branch
    %31 = sbr.rel (0) target = $region37
  $region36: #{tpu_custom_call.1} parent=0 // pred_region
    _
  $region37: #{tpu_custom_call.1} parent=0 // pred_fallthru
    _
  %v32 = vld [vmem:[%s0] sm:$0xff]
  %v33 = vld [vmem:[%s0 + $0x8] sm:$0xff]
  %v34 = vld [vmem:[%s0 + $0x10] sm:$0xff]
  %v35 = vld [vmem:[%s0 + $0x18] sm:$0xff]
  %v36 = vld [vmem:[%s0 + $0x20] sm:$0xff]
  %v37 = vld [vmem:[%s0 + $0x28] sm:$0xff]
  %v38 = vld [vmem:[%s0 + $0x30] sm:$0xff]
  %v39 = vld [vmem:[%s0 + $0x38] sm:$0xff]
  %v40 = vld [vmem:[%s0 + $0x40] sm:$0xff]
  %v41 = vld [vmem:[%s0 + $0x48] sm:$0xff]
  %v42 = vld [vmem:[%s0 + $0x50] sm:$0xff]
  %v43 = vld [vmem:[%s0 + $0x58] sm:$0xff]
  %v44 = vld [vmem:[%s0 + $0x60] sm:$0xff]
  %v45 = vld [vmem:[%s0 + $0x68] sm:$0xff]
  %v46 = vld [vmem:[%s0 + $0x70] sm:$0xff]
  %v47 = vld [vmem:[%s0 + $0x78] sm:$0xff]
  %v48 = vld [vmem:[%s0 + $0x80] sm:$0xff]
  %v49 = vld [vmem:[%s0 + $0x88] sm:$0xff]
  %v50 = vld [vmem:[%s0 + $0x90] sm:$0xff]
  %v51 = vld [vmem:[%s0 + $0x98] sm:$0xff]
  %v52 = vld [vmem:[%s0 + $0xa0] sm:$0xff]
  %v53 = vld [vmem:[%s0 + $0xa8] sm:$0xff]
  %v54 = vld [vmem:[%s0 + $0xb0] sm:$0xff]
  %v55 = vld [vmem:[%s0 + $0xb8] sm:$0xff]
  %v56 = vld [vmem:[%s0 + $0xc0] sm:$0xff]
  %v57 = vld [vmem:[%s0 + $0xc8] sm:$0xff]
  %v58 = vld [vmem:[%s1] sm:$0xff]
  %v59 = vld [vmem:[%s1 + $0x8] sm:$0xff]
  %v60 = vld [vmem:[%s2] sm:$0x1]
  %v62 = vlaneseq
  %v63 = vshrl.u32 %v62, 7
  %v64 = vsub.s32 0, %v63
  %v65 = vrot.slane %v60, %v64
  %vm67 = vcmask 130048
  %v69 = vsel %vm67, %v32, 0
  %v72 = vsel %vm67, %v33, 0
  %v75 = vsel %vm67, %v34, 0
  %v78 = vsel %vm67, %v35, 0
  %v81 = vsel %vm67, %v36, 0
  %v84 = vsel %vm67, %v37, 0
  %v87 = vsel %vm67, %v38, 0
  %v90 = vsel %vm67, %v39, 0
  %v93 = vsel %vm67, %v40, 0
  %v96 = vsel %vm67, %v41, 0
  %v99 = vsel %vm67, %v42, 0
  %v102 = vsel %vm67, %v43, 0
  %v105 = vsel %vm67, %v44, 0
  %v108 = vsel %vm67, %v45, 0
  %v111 = vsel %vm67, %v46, 0
  %v114 = vsel %vm67, %v47, 0
  %v117 = vsel %vm67, %v48, 0
  %v120 = vsel %vm67, %v49, 0
  %v123 = vsel %vm67, %v50, 0
  %v126 = vsel %vm67, %v51, 0
  %v129 = vsel %vm67, %v52, 0
  %v132 = vsel %vm67, %v53, 0
  %v135 = vsel %vm67, %v54, 0
  %v138 = vsel %vm67, %v55, 0
  %v141 = vsel %vm67, %v56, 0
  %v144 = vsel %vm67, %v57, 0
  %146 = vmatprep.subr.mxu0 0.0
  %147 = vmatpush1.msra.mxu0 0.0
  %148 = vmatprep.subr.mxu0 0.0
  %149 = vmatpush1.msra.mxu0 0.0
  %150 = vmatprep.subr.mxu0 0.0
  %151 = vmatpush1.msra.mxu0 0.0
  %152 = vmatprep.subr.mxu0 0.0
  %153 = vmatpush1.msra.mxu0 0.0
  %154 = vmatprep.subr.mxu0 0.0
  %155 = vmatpush1.msra.mxu0 0.0
  %156 = vmatprep.subr.mxu0 0.0
  %157 = vmatpush1.msra.mxu0 0.0
  %158 = vmatprep.subr.mxu0 0.0
  %159 = vmatpush1.msra.mxu0 0.0
  %160 = vmatprep.subr.mxu0 0.0
  %161 = vmatpush1.msra.mxu0 0.0
  %162 = vmatprep.subr.mxu0 0.0
  %163 = vmatpush1.msra.mxu0 0.0
  %164 = vmatprep.subr.mxu0 0.0
  %165 = vmatpush1.msra.mxu0 0.0
  %166 = vmatprep.subr.mxu0 0.0
  %167 = vmatpush1.msra.mxu0 0.0
  %168 = vmatprep.subr.mxu0 0.0
  %169 = vmatpush1.msra.mxu0 0.0
  %170 = vmatprep.subr.mxu0 0.0
  %171 = vmatpush1.msra.mxu0 0.0
  %172 = vmatprep.subr.mxu0 0.0
  %173 = vmatpush1.msra.mxu0 0.0
  %174 = vmatprep.subr.mxu0 0.0
  %175 = vmatpush1.msra.mxu0 %v59
  %176 = vmatprep.subr.mxu0 0.0
  %177 = vmatpush1.msra.mxu0 %v58
  %178 = vmatprep.subr.mxu0 0.0
  %179 = vmatpush2.msra.mxu0 0.0
  %180 = vmatprep.subr.mxu0 0.0
  %181 = vmatpush2.msra.mxu0 0.0
  %182 = vmatprep.subr.mxu0 0.0
  %183 = vmatpush2.msra.mxu0 0.0
  %184 = vmatprep.subr.mxu0 0.0
  %185 = vmatpush2.msra.mxu0 0.0
  %186 = vmatprep.subr.mxu0 0.0
  %187 = vmatpush2.msra.mxu0 0.0
  %188 = vmatprep.subr.mxu0 0.0
  %189 = vmatpush2.msra.mxu0 0.0
  %190 = vmatprep.subr.mxu0 0.0
  %191 = vmatpush2.msra.mxu0 0.0
  %192 = vmatprep.subr.mxu0 0.0
  %193 = vmatpush2.msra.mxu0 0.0
  %194 = vmatprep.subr.mxu0 0.0
  %195 = vmatpush2.msra.mxu0 0.0
  %196 = vmatprep.subr.mxu0 0.0
  %197 = vmatpush2.msra.mxu0 0.0
  %198 = vmatprep.subr.mxu0 0.0
  %199 = vmatpush2.msra.mxu0 0.0
  %200 = vmatprep.subr.mxu0 0.0
  %201 = vmatpush2.msra.mxu0 0.0
  %202 = vmatprep.subr.mxu0 0.0
  %203 = vmatpush2.msra.mxu0 0.0
  %204 = vmatprep.subr.mxu0 0.0
  %205 = vmatpush2.msra.mxu0 0.0
  %206 = vmatprep.subr.mxu0 0.0
  %207 = vmatpush2.msra.mxu0 0.0
  %208 = vmatprep.subr.mxu0 0.0
  %209 = vmatpush2.msra.mxu0 0.0
  %210 = vmatprep.mubr.f32.mxu0 0.0
  %211 = vmatmul.mubr.f32.gmra.mxu0 %v69
  %v212 = vpop.f32.mrf.mxu0
  %v213 = vadd.f32 %v65, %v212
  %v214 = vpop.f32.mrf.mxu0
  %215 = vmatprep.mubr.f32.mxu0 0.0
  %216 = vmatmul.mubr.f32.gmra.mxu0 %v72
  %v217 = vpop.f32.mrf.mxu0
  %v218 = vadd.f32 %v65, %v217
  %v219 = vpop.f32.mrf.mxu0
  %220 = vmatprep.mubr.f32.mxu0 0.0
  %221 = vmatmul.mubr.f32.gmra.mxu0 %v75
  %v222 = vpop.f32.mrf.mxu0
  %v223 = vadd.f32 %v65, %v222
  %v224 = vpop.f32.mrf.mxu0
  %225 = vmatprep.mubr.f32.mxu0 0.0
  %226 = vmatmul.mubr.f32.gmra.mxu0 %v78
  %v227 = vpop.f32.mrf.mxu0
  %v228 = vadd.f32 %v65, %v227
  %v229 = vpop.f32.mrf.mxu0
  %230 = vmatprep.mubr.f32.mxu0 0.0
  %231 = vmatmul.mubr.f32.gmra.mxu0 %v81
  %v232 = vpop.f32.mrf.mxu0
  %v233 = vadd.f32 %v65, %v232
  %v234 = vpop.f32.mrf.mxu0
  %235 = vmatprep.mubr.f32.mxu0 0.0
  %236 = vmatmul.mubr.f32.gmra.mxu0 %v84
  %v237 = vpop.f32.mrf.mxu0
  %v238 = vadd.f32 %v65, %v237
  %v239 = vpop.f32.mrf.mxu0
  %240 = vmatprep.mubr.f32.mxu0 0.0
  %241 = vmatmul.mubr.f32.gmra.mxu0 %v87
  %v242 = vpop.f32.mrf.mxu0
  %v243 = vadd.f32 %v65, %v242
  %v244 = vpop.f32.mrf.mxu0
  %245 = vmatprep.mubr.f32.mxu0 0.0
  %246 = vmatmul.mubr.f32.gmra.mxu0 %v90
  %v247 = vpop.f32.mrf.mxu0
  %v248 = vadd.f32 %v65, %v247
  %v249 = vpop.f32.mrf.mxu0
  %250 = vmatprep.mubr.f32.mxu0 0.0
  %251 = vmatmul.mubr.f32.gmra.mxu0 %v93
  %v252 = vpop.f32.mrf.mxu0
  %v253 = vadd.f32 %v65, %v252
  %v254 = vpop.f32.mrf.mxu0
  %255 = vmatprep.mubr.f32.mxu0 0.0
  %256 = vmatmul.mubr.f32.gmra.mxu0 %v96
  %v257 = vpop.f32.mrf.mxu0
  %v258 = vadd.f32 %v65, %v257
  %v259 = vpop.f32.mrf.mxu0
  %260 = vmatprep.mubr.f32.mxu0 0.0
  %261 = vmatmul.mubr.f32.gmra.mxu0 %v99
  %v262 = vpop.f32.mrf.mxu0
  %v263 = vadd.f32 %v65, %v262
  %v264 = vpop.f32.mrf.mxu0
  %265 = vmatprep.mubr.f32.mxu0 0.0
  %266 = vmatmul.mubr.f32.gmra.mxu0 %v102
  %v267 = vpop.f32.mrf.mxu0
  %v268 = vadd.f32 %v65, %v267
  %v269 = vpop.f32.mrf.mxu0
  %270 = vmatprep.mubr.f32.mxu0 0.0
  %271 = vmatmul.mubr.f32.gmra.mxu0 %v105
  %v272 = vpop.f32.mrf.mxu0
  %v273 = vadd.f32 %v65, %v272
  %v274 = vpop.f32.mrf.mxu0
  %275 = vmatprep.mubr.f32.mxu0 0.0
  %276 = vmatmul.mubr.f32.gmra.mxu0 %v108
  %v277 = vpop.f32.mrf.mxu0
  %v278 = vadd.f32 %v65, %v277
  %v279 = vpop.f32.mrf.mxu0
  %280 = vmatprep.mubr.f32.mxu0 0.0
  %281 = vmatmul.mubr.f32.gmra.mxu0 %v111
  %v282 = vpop.f32.mrf.mxu0
  %v283 = vadd.f32 %v65, %v282
  %v284 = vpop.f32.mrf.mxu0
  %285 = vmatprep.mubr.f32.mxu0 0.0
  %286 = vmatmul.mubr.f32.gmra.mxu0 %v114
  %v287 = vpop.f32.mrf.mxu0
  %v288 = vadd.f32 %v65, %v287
  %v289 = vpop.f32.mrf.mxu0
  %290 = vmatprep.mubr.f32.mxu0 0.0
  %291 = vmatmul.mubr.f32.gmra.mxu0 %v117
  %v292 = vpop.f32.mrf.mxu0
  %v293 = vadd.f32 %v65, %v292
  %v294 = vpop.f32.mrf.mxu0
  %295 = vmatprep.mubr.f32.mxu0 0.0
  %296 = vmatmul.mubr.f32.gmra.mxu0 %v120
  %v297 = vpop.f32.mrf.mxu0
  %v298 = vadd.f32 %v65, %v297
  %v299 = vpop.f32.mrf.mxu0
  %300 = vmatprep.mubr.f32.mxu0 0.0
  %301 = vmatmul.mubr.f32.gmra.mxu0 %v123
  %v302 = vpop.f32.mrf.mxu0
  %v303 = vadd.f32 %v65, %v302
  %v304 = vpop.f32.mrf.mxu0
  %305 = vmatprep.mubr.f32.mxu0 0.0
  %306 = vmatmul.mubr.f32.gmra.mxu0 %v126
  %v307 = vpop.f32.mrf.mxu0
  %v308 = vadd.f32 %v65, %v307
  %v309 = vpop.f32.mrf.mxu0
  %310 = vmatprep.mubr.f32.mxu0 0.0
  %311 = vmatmul.mubr.f32.gmra.mxu0 %v129
  %v312 = vpop.f32.mrf.mxu0
  %v313 = vadd.f32 %v65, %v312
  %v314 = vpop.f32.mrf.mxu0
  %315 = vmatprep.mubr.f32.mxu0 0.0
  %316 = vmatmul.mubr.f32.gmra.mxu0 %v132
  %v317 = vpop.f32.mrf.mxu0
  %v318 = vadd.f32 %v65, %v317
  %v319 = vpop.f32.mrf.mxu0
  %320 = vmatprep.mubr.f32.mxu0 0.0
  %321 = vmatmul.mubr.f32.gmra.mxu0 %v135
  %v322 = vpop.f32.mrf.mxu0
  %v323 = vadd.f32 %v65, %v322
  %v324 = vpop.f32.mrf.mxu0
  %325 = vmatprep.mubr.f32.mxu0 0.0
  %326 = vmatmul.mubr.f32.gmra.mxu0 %v138
  %v327 = vpop.f32.mrf.mxu0
  %v328 = vadd.f32 %v65, %v327
  %v329 = vpop.f32.mrf.mxu0
  %330 = vmatprep.mubr.f32.mxu0 0.0
  %331 = vmatmul.mubr.f32.gmra.mxu0 %v141
  %v332 = vpop.f32.mrf.mxu0
  %v333 = vadd.f32 %v65, %v332
  %v334 = vpop.f32.mrf.mxu0
  %335 = vmatprep.mubr.f32.mxu0 0.0
  %336 = vmatmul.mubr.f32.gmra.mxu0 %v144
  %v337 = vpop.f32.mrf.mxu0
  %v338 = vadd.f32 %v65, %v337
  %v339 = vpop.f32.mrf.mxu0
  %340 = vdwg.mxu0
  %v341 = vmax.f32 %v213, 0.0
  %v342 = vmax.f32 %v218, 0.0
  %v343 = vmax.f32 %v223, 0.0
  %v344 = vmax.f32 %v228, 0.0
  %v345 = vmax.f32 %v233, 0.0
  %v346 = vmax.f32 %v238, 0.0
  %v347 = vmax.f32 %v243, 0.0
  %v348 = vmax.f32 %v248, 0.0
  %v349 = vmax.f32 %v253, 0.0
  %v350 = vmax.f32 %v258, 0.0
  %v351 = vmax.f32 %v263, 0.0
  %v352 = vmax.f32 %v268, 0.0
  %v353 = vmax.f32 %v273, 0.0
  %v354 = vmax.f32 %v278, 0.0
  %v355 = vmax.f32 %v283, 0.0
  %v356 = vmax.f32 %v288, 0.0
  %v357 = vmax.f32 %v293, 0.0
  %v358 = vmax.f32 %v298, 0.0
  %v359 = vmax.f32 %v303, 0.0
  %v360 = vmax.f32 %v308, 0.0
  %v361 = vmax.f32 %v313, 0.0
  %v362 = vmax.f32 %v318, 0.0
  %v363 = vmax.f32 %v323, 0.0
  %v364 = vmax.f32 %v328, 0.0
  %v365 = vmax.f32 %v333, 0.0
  %v366 = vmax.f32 %v338, 0.0
  %v367 = vld [vmem:[%s3] sm:$0xff]
  %v368 = vld [vmem:[%s3 + $0x8] sm:$0xff]
  %v369 = vld [vmem:[%s3 + $0x10] sm:$0xff]
  %v370 = vld [vmem:[%s3 + $0x18] sm:$0xff]
  %v371 = vld [vmem:[%s4] sm:$0x1]
  %v373 = vlaneseq
  %v374 = vshrl.u32 %v373, 7
  %v375 = vsub.s32 0, %v374
  %v376 = vrot.slane %v371, %v375
  %vm378 = vcmask 261120
  %v380 = vsel %vm378, %v341, 0
  %v383 = vsel %vm378, %v342, 0
  %v386 = vsel %vm378, %v343, 0
  %v389 = vsel %vm378, %v344, 0
  %v392 = vsel %vm378, %v345, 0
  %v395 = vsel %vm378, %v346, 0
  %v398 = vsel %vm378, %v347, 0
  %v401 = vsel %vm378, %v348, 0
  %v404 = vsel %vm378, %v349, 0
  %v407 = vsel %vm378, %v350, 0
  %v410 = vsel %vm378, %v351, 0
  %v413 = vsel %vm378, %v352, 0
  %v416 = vsel %vm378, %v353, 0
  %v419 = vsel %vm378, %v354, 0
  %v422 = vsel %vm378, %v355, 0
  %v425 = vsel %vm378, %v356, 0
  %v428 = vsel %vm378, %v357, 0
  %v431 = vsel %vm378, %v358, 0
  %v434 = vsel %vm378, %v359, 0
  %v437 = vsel %vm378, %v360, 0
  %v440 = vsel %vm378, %v361, 0
  %v443 = vsel %vm378, %v362, 0
  %v446 = vsel %vm378, %v363, 0
  %v449 = vsel %vm378, %v364, 0
  %v452 = vsel %vm378, %v365, 0
  %v455 = vsel %vm378, %v366, 0
  %457 = vmatprep.subr.mxu0 0.0
  %458 = vmatpush1.msra.mxu0 0.0
  %459 = vmatprep.subr.mxu0 0.0
  %460 = vmatpush1.msra.mxu0 0.0
  %461 = vmatprep.subr.mxu0 0.0
  %462 = vmatpush1.msra.mxu0 0.0
  %463 = vmatprep.subr.mxu0 0.0
  %464 = vmatpush1.msra.mxu0 0.0
  %465 = vmatprep.subr.mxu0 0.0
  %466 = vmatpush1.msra.mxu0 0.0
  %467 = vmatprep.subr.mxu0 0.0
  %468 = vmatpush1.msra.mxu0 0.0
  %469 = vmatprep.subr.mxu0 0.0
  %470 = vmatpush1.msra.mxu0 0.0
  %471 = vmatprep.subr.mxu0 0.0
  %472 = vmatpush1.msra.mxu0 0.0
  %473 = vmatprep.subr.mxu0 0.0
  %474 = vmatpush1.msra.mxu0 0.0
  %475 = vmatprep.subr.mxu0 0.0
  %476 = vmatpush1.msra.mxu0 0.0
  %477 = vmatprep.subr.mxu0 0.0
  %478 = vmatpush1.msra.mxu0 0.0
  %479 = vmatprep.subr.mxu0 0.0
  %480 = vmatpush1.msra.mxu0 0.0
  %481 = vmatprep.subr.mxu0 0.0
  %482 = vmatpush1.msra.mxu0 %v370
  %483 = vmatprep.subr.mxu0 0.0
  %484 = vmatpush1.msra.mxu0 %v369
  %485 = vmatprep.subr.mxu0 0.0
  %486 = vmatpush1.msra.mxu0 %v368
  %487 = vmatprep.subr.mxu0 0.0
  %488 = vmatpush1.msra.mxu0 %v367
  %489 = vmatprep.subr.mxu0 0.0
  %490 = vmatpush2.msra.mxu0 0.0
  %491 = vmatprep.subr.mxu0 0.0
  %492 = vmatpush2.msra.mxu0 0.0
  %493 = vmatprep.subr.mxu0 0.0
  %494 = vmatpush2.msra.mxu0 0.0
  %495 = vmatprep.subr.mxu0 0.0
  %496 = vmatpush2.msra.mxu0 0.0
  %497 = vmatprep.subr.mxu0 0.0
  %498 = vmatpush2.msra.mxu0 0.0
  %499 = vmatprep.subr.mxu0 0.0
  %500 = vmatpush2.msra.mxu0 0.0
  %501 = vmatprep.subr.mxu0 0.0
  %502 = vmatpush2.msra.mxu0 0.0
  %503 = vmatprep.subr.mxu0 0.0
  %504 = vmatpush2.msra.mxu0 0.0
  %505 = vmatprep.subr.mxu0 0.0
  %506 = vmatpush2.msra.mxu0 0.0
  %507 = vmatprep.subr.mxu0 0.0
  %508 = vmatpush2.msra.mxu0 0.0
  %509 = vmatprep.subr.mxu0 0.0
  %510 = vmatpush2.msra.mxu0 0.0
  %511 = vmatprep.subr.mxu0 0.0
  %512 = vmatpush2.msra.mxu0 0.0
  %513 = vmatprep.subr.mxu0 0.0
  %514 = vmatpush2.msra.mxu0 0.0
  %515 = vmatprep.subr.mxu0 0.0
  %516 = vmatpush2.msra.mxu0 0.0
  %517 = vmatprep.subr.mxu0 0.0
  %518 = vmatpush2.msra.mxu0 0.0
  %519 = vmatprep.subr.mxu0 0.0
  %520 = vmatpush2.msra.mxu0 0.0
  %521 = vmatprep.mubr.f32.mxu0 0.0
  %522 = vmatmul.mubr.f32.gmra.mxu0 %v380
  %v523 = vpop.f32.mrf.mxu0
  %v524 = vadd.f32 %v376, %v523
  %v525 = vpop.f32.mrf.mxu0
  %526 = vmatprep.mubr.f32.mxu0 0.0
  %527 = vmatmul.mubr.f32.gmra.mxu0 %v383
  %v528 = vpop.f32.mrf.mxu0
  %v529 = vadd.f32 %v376, %v528
  %v530 = vpop.f32.mrf.mxu0
  %531 = vmatprep.mubr.f32.mxu0 0.0
  %532 = vmatmul.mubr.f32.gmra.mxu0 %v386
  %v533 = vpop.f32.mrf.mxu0
  %v534 = vadd.f32 %v376, %v533
  %v535 = vpop.f32.mrf.mxu0
  %536 = vmatprep.mubr.f32.mxu0 0.0
  %537 = vmatmul.mubr.f32.gmra.mxu0 %v389
  %v538 = vpop.f32.mrf.mxu0
  %v539 = vadd.f32 %v376, %v538
  %v540 = vpop.f32.mrf.mxu0
  %541 = vmatprep.mubr.f32.mxu0 0.0
  %542 = vmatmul.mubr.f32.gmra.mxu0 %v392
  %v543 = vpop.f32.mrf.mxu0
  %v544 = vadd.f32 %v376, %v543
  %v545 = vpop.f32.mrf.mxu0
  %546 = vmatprep.mubr.f32.mxu0 0.0
  %547 = vmatmul.mubr.f32.gmra.mxu0 %v395
  %v548 = vpop.f32.mrf.mxu0
  %v549 = vadd.f32 %v376, %v548
  %v550 = vpop.f32.mrf.mxu0
  %551 = vmatprep.mubr.f32.mxu0 0.0
  %552 = vmatmul.mubr.f32.gmra.mxu0 %v398
  %v553 = vpop.f32.mrf.mxu0
  %v554 = vadd.f32 %v376, %v553
  %v555 = vpop.f32.mrf.mxu0
  %556 = vmatprep.mubr.f32.mxu0 0.0
  %557 = vmatmul.mubr.f32.gmra.mxu0 %v401
  %v558 = vpop.f32.mrf.mxu0
  %v559 = vadd.f32 %v376, %v558
  %v560 = vpop.f32.mrf.mxu0
  %561 = vmatprep.mubr.f32.mxu0 0.0
  %562 = vmatmul.mubr.f32.gmra.mxu0 %v404
  %v563 = vpop.f32.mrf.mxu0
  %v564 = vadd.f32 %v376, %v563
  %v565 = vpop.f32.mrf.mxu0
  %566 = vmatprep.mubr.f32.mxu0 0.0
  %567 = vmatmul.mubr.f32.gmra.mxu0 %v407
  %v568 = vpop.f32.mrf.mxu0
  %v569 = vadd.f32 %v376, %v568
  %v570 = vpop.f32.mrf.mxu0
  %571 = vmatprep.mubr.f32.mxu0 0.0
  %572 = vmatmul.mubr.f32.gmra.mxu0 %v410
  %v573 = vpop.f32.mrf.mxu0
  %v574 = vadd.f32 %v376, %v573
  %v575 = vpop.f32.mrf.mxu0
  %576 = vmatprep.mubr.f32.mxu0 0.0
  %577 = vmatmul.mubr.f32.gmra.mxu0 %v413
  %v578 = vpop.f32.mrf.mxu0
  %v579 = vadd.f32 %v376, %v578
  %v580 = vpop.f32.mrf.mxu0
  %581 = vmatprep.mubr.f32.mxu0 0.0
  %582 = vmatmul.mubr.f32.gmra.mxu0 %v416
  %v583 = vpop.f32.mrf.mxu0
  %v584 = vadd.f32 %v376, %v583
  %v585 = vpop.f32.mrf.mxu0
  %586 = vmatprep.mubr.f32.mxu0 0.0
  %587 = vmatmul.mubr.f32.gmra.mxu0 %v419
  %v588 = vpop.f32.mrf.mxu0
  %v589 = vadd.f32 %v376, %v588
  %v590 = vpop.f32.mrf.mxu0
  %591 = vmatprep.mubr.f32.mxu0 0.0
  %592 = vmatmul.mubr.f32.gmra.mxu0 %v422
  %v593 = vpop.f32.mrf.mxu0
  %v594 = vadd.f32 %v376, %v593
  %v595 = vpop.f32.mrf.mxu0
  %596 = vmatprep.mubr.f32.mxu0 0.0
  %597 = vmatmul.mubr.f32.gmra.mxu0 %v425
  %v598 = vpop.f32.mrf.mxu0
  %v599 = vadd.f32 %v376, %v598
  %v600 = vpop.f32.mrf.mxu0
  %601 = vmatprep.mubr.f32.mxu0 0.0
  %602 = vmatmul.mubr.f32.gmra.mxu0 %v428
  %v603 = vpop.f32.mrf.mxu0
  %v604 = vadd.f32 %v376, %v603
  %v605 = vpop.f32.mrf.mxu0
  %606 = vmatprep.mubr.f32.mxu0 0.0
  %607 = vmatmul.mubr.f32.gmra.mxu0 %v431
  %v608 = vpop.f32.mrf.mxu0
  %v609 = vadd.f32 %v376, %v608
  %v610 = vpop.f32.mrf.mxu0
  %611 = vmatprep.mubr.f32.mxu0 0.0
  %612 = vmatmul.mubr.f32.gmra.mxu0 %v434
  %v613 = vpop.f32.mrf.mxu0
  %v614 = vadd.f32 %v376, %v613
  %v615 = vpop.f32.mrf.mxu0
  %616 = vmatprep.mubr.f32.mxu0 0.0
  %617 = vmatmul.mubr.f32.gmra.mxu0 %v437
  %v618 = vpop.f32.mrf.mxu0
  %v619 = vadd.f32 %v376, %v618
  %v620 = vpop.f32.mrf.mxu0
  %621 = vmatprep.mubr.f32.mxu0 0.0
  %622 = vmatmul.mubr.f32.gmra.mxu0 %v440
  %v623 = vpop.f32.mrf.mxu0
  %v624 = vadd.f32 %v376, %v623
  %v625 = vpop.f32.mrf.mxu0
  %626 = vmatprep.mubr.f32.mxu0 0.0
  %627 = vmatmul.mubr.f32.gmra.mxu0 %v443
  %v628 = vpop.f32.mrf.mxu0
  %v629 = vadd.f32 %v376, %v628
  %v630 = vpop.f32.mrf.mxu0
  %631 = vmatprep.mubr.f32.mxu0 0.0
  %632 = vmatmul.mubr.f32.gmra.mxu0 %v446
  %v633 = vpop.f32.mrf.mxu0
  %v634 = vadd.f32 %v376, %v633
  %v635 = vpop.f32.mrf.mxu0
  %636 = vmatprep.mubr.f32.mxu0 0.0
  %637 = vmatmul.mubr.f32.gmra.mxu0 %v449
  %v638 = vpop.f32.mrf.mxu0
  %v639 = vadd.f32 %v376, %v638
  %v640 = vpop.f32.mrf.mxu0
  %641 = vmatprep.mubr.f32.mxu0 0.0
  %642 = vmatmul.mubr.f32.gmra.mxu0 %v452
  %v643 = vpop.f32.mrf.mxu0
  %v644 = vadd.f32 %v376, %v643
  %v645 = vpop.f32.mrf.mxu0
  %646 = vmatprep.mubr.f32.mxu0 0.0
  %647 = vmatmul.mubr.f32.gmra.mxu0 %v455
  %v648 = vpop.f32.mrf.mxu0
  %v649 = vadd.f32 %v376, %v648
  %v650 = vpop.f32.mrf.mxu0
  %651 = vdwg.mxu0
  %v652 = vmax.f32 %v524, 0.0
  %v653 = vmax.f32 %v529, 0.0
  %v654 = vmax.f32 %v534, 0.0
  %v655 = vmax.f32 %v539, 0.0
  %v656 = vmax.f32 %v544, 0.0
  %v657 = vmax.f32 %v549, 0.0
  %v658 = vmax.f32 %v554, 0.0
  %v659 = vmax.f32 %v559, 0.0
  %v660 = vmax.f32 %v564, 0.0
  %v661 = vmax.f32 %v569, 0.0
  %v662 = vmax.f32 %v574, 0.0
  %v663 = vmax.f32 %v579, 0.0
  %v664 = vmax.f32 %v584, 0.0
  %v665 = vmax.f32 %v589, 0.0
  %v666 = vmax.f32 %v594, 0.0
  %v667 = vmax.f32 %v599, 0.0
  %v668 = vmax.f32 %v604, 0.0
  %v669 = vmax.f32 %v609, 0.0
  %v670 = vmax.f32 %v614, 0.0
  %v671 = vmax.f32 %v619, 0.0
  %v672 = vmax.f32 %v624, 0.0
  %v673 = vmax.f32 %v629, 0.0
  %v674 = vmax.f32 %v634, 0.0
  %v675 = vmax.f32 %v639, 0.0
  %v676 = vmax.f32 %v644, 0.0
  %v677 = vmax.f32 %v649, 0.0
  %v678 = vld [vmem:[%s5] sm:$0xff]
  %v679 = vld [vmem:[%s5 + $0x8] sm:$0xff]
  %v680 = vld [vmem:[%s5 + $0x10] sm:$0xff]
  %v681 = vld [vmem:[%s5 + $0x18] sm:$0xff]
  %v682 = vld [vmem:[%s6] sm:$0x1]
  %v684 = vlaneseq
  %v685 = vshrl.u32 %v684, 7
  %v686 = vsub.s32 0, %v685
  %v687 = vrot.slane %v682, %v686
  %v690 = vsel %vm378, %v652, 0
  %v693 = vsel %vm378, %v653, 0
  %v696 = vsel %vm378, %v654, 0
  %v699 = vsel %vm378, %v655, 0
  %v702 = vsel %vm378, %v656, 0
  %v705 = vsel %vm378, %v657, 0
  %v708 = vsel %vm378, %v658, 0
  %v711 = vsel %vm378, %v659, 0
  %v714 = vsel %vm378, %v660, 0
  %v717 = vsel %vm378, %v661, 0
  %v720 = vsel %vm378, %v662, 0
  %v723 = vsel %vm378, %v663, 0
  %v726 = vsel %vm378, %v664, 0
  %v729 = vsel %vm378, %v665, 0
  %v732 = vsel %vm378, %v666, 0
  %v735 = vsel %vm378, %v667, 0
  %v738 = vsel %vm378, %v668, 0
  %v741 = vsel %vm378, %v669, 0
  %v744 = vsel %vm378, %v670, 0
  %v747 = vsel %vm378, %v671, 0
  %v750 = vsel %vm378, %v672, 0
  %v753 = vsel %vm378, %v673, 0
  %v756 = vsel %vm378, %v674, 0
  %v759 = vsel %vm378, %v675, 0
  %v762 = vsel %vm378, %v676, 0
  %v765 = vsel %vm378, %v677, 0
  %767 = vmatprep.subr.mxu0 0.0
  %768 = vmatpush1.msra.mxu0 0.0
  %769 = vmatprep.subr.mxu0 0.0
  %770 = vmatpush1.msra.mxu0 0.0
  %771 = vmatprep.subr.mxu0 0.0
  %772 = vmatpush1.msra.mxu0 0.0
  %773 = vmatprep.subr.mxu0 0.0
  %774 = vmatpush1.msra.mxu0 0.0
  %775 = vmatprep.subr.mxu0 0.0
  %776 = vmatpush1.msra.mxu0 0.0
  %777 = vmatprep.subr.mxu0 0.0
  %778 = vmatpush1.msra.mxu0 0.0
  %779 = vmatprep.subr.mxu0 0.0
  %780 = vmatpush1.msra.mxu0 0.0
  %781 = vmatprep.subr.mxu0 0.0
  %782 = vmatpush1.msra.mxu0 0.0
  %783 = vmatprep.subr.mxu0 0.0
  %784 = vmatpush1.msra.mxu0 0.0
  %785 = vmatprep.subr.mxu0 0.0
  %786 = vmatpush1.msra.mxu0 0.0
  %787 = vmatprep.subr.mxu0 0.0
  %788 = vmatpush1.msra.mxu0 0.0
  %789 = vmatprep.subr.mxu0 0.0
  %790 = vmatpush1.msra.mxu0 0.0
  %791 = vmatprep.subr.mxu0 0.0
  %792 = vmatpush1.msra.mxu0 %v681
  %793 = vmatprep.subr.mxu0 0.0
  %794 = vmatpush1.msra.mxu0 %v680
  %795 = vmatprep.subr.mxu0 0.0
  %796 = vmatpush1.msra.mxu0 %v679
  %797 = vmatprep.subr.mxu0 0.0
  %798 = vmatpush1.msra.mxu0 %v678
  %799 = vmatprep.subr.mxu0 0.0
  %800 = vmatpush2.msra.mxu0 0.0
  %801 = vmatprep.subr.mxu0 0.0
  %802 = vmatpush2.msra.mxu0 0.0
  %803 = vmatprep.subr.mxu0 0.0
  %804 = vmatpush2.msra.mxu0 0.0
  %805 = vmatprep.subr.mxu0 0.0
  %806 = vmatpush2.msra.mxu0 0.0
  %807 = vmatprep.subr.mxu0 0.0
  %808 = vmatpush2.msra.mxu0 0.0
  %809 = vmatprep.subr.mxu0 0.0
  %810 = vmatpush2.msra.mxu0 0.0
  %811 = vmatprep.subr.mxu0 0.0
  %812 = vmatpush2.msra.mxu0 0.0
  %813 = vmatprep.subr.mxu0 0.0
  %814 = vmatpush2.msra.mxu0 0.0
  %815 = vmatprep.subr.mxu0 0.0
  %816 = vmatpush2.msra.mxu0 0.0
  %817 = vmatprep.subr.mxu0 0.0
  %818 = vmatpush2.msra.mxu0 0.0
  %819 = vmatprep.subr.mxu0 0.0
  %820 = vmatpush2.msra.mxu0 0.0
  %821 = vmatprep.subr.mxu0 0.0
  %822 = vmatpush2.msra.mxu0 0.0
  %823 = vmatprep.subr.mxu0 0.0
  %824 = vmatpush2.msra.mxu0 0.0
  %825 = vmatprep.subr.mxu0 0.0
  %826 = vmatpush2.msra.mxu0 0.0
  %827 = vmatprep.subr.mxu0 0.0
  %828 = vmatpush2.msra.mxu0 0.0
  %829 = vmatprep.subr.mxu0 0.0
  %830 = vmatpush2.msra.mxu0 0.0
  %831 = vmatprep.mubr.f32.mxu0 0.0
  %832 = vmatmul.mubr.f32.gmra.mxu0 %v690
  %v833 = vpop.f32.mrf.mxu0
  %v834 = vadd.f32 %v687, %v833
  %v835 = vpop.f32.mrf.mxu0
  %836 = vmatprep.mubr.f32.mxu0 0.0
  %837 = vmatmul.mubr.f32.gmra.mxu0 %v693
  %v838 = vpop.f32.mrf.mxu0
  %v839 = vadd.f32 %v687, %v838
  %v840 = vpop.f32.mrf.mxu0
  %841 = vmatprep.mubr.f32.mxu0 0.0
  %842 = vmatmul.mubr.f32.gmra.mxu0 %v696
  %v843 = vpop.f32.mrf.mxu0
  %v844 = vadd.f32 %v687, %v843
  %v845 = vpop.f32.mrf.mxu0
  %846 = vmatprep.mubr.f32.mxu0 0.0
  %847 = vmatmul.mubr.f32.gmra.mxu0 %v699
  %v848 = vpop.f32.mrf.mxu0
  %v849 = vadd.f32 %v687, %v848
  %v850 = vpop.f32.mrf.mxu0
  %851 = vmatprep.mubr.f32.mxu0 0.0
  %852 = vmatmul.mubr.f32.gmra.mxu0 %v702
  %v853 = vpop.f32.mrf.mxu0
  %v854 = vadd.f32 %v687, %v853
  %v855 = vpop.f32.mrf.mxu0
  %856 = vmatprep.mubr.f32.mxu0 0.0
  %857 = vmatmul.mubr.f32.gmra.mxu0 %v705
  %v858 = vpop.f32.mrf.mxu0
  %v859 = vadd.f32 %v687, %v858
  %v860 = vpop.f32.mrf.mxu0
  %861 = vmatprep.mubr.f32.mxu0 0.0
  %862 = vmatmul.mubr.f32.gmra.mxu0 %v708
  %v863 = vpop.f32.mrf.mxu0
  %v864 = vadd.f32 %v687, %v863
  %v865 = vpop.f32.mrf.mxu0
  %866 = vmatprep.mubr.f32.mxu0 0.0
  %867 = vmatmul.mubr.f32.gmra.mxu0 %v711
  %v868 = vpop.f32.mrf.mxu0
  %v869 = vadd.f32 %v687, %v868
  %v870 = vpop.f32.mrf.mxu0
  %871 = vmatprep.mubr.f32.mxu0 0.0
  %872 = vmatmul.mubr.f32.gmra.mxu0 %v714
  %v873 = vpop.f32.mrf.mxu0
  %v874 = vadd.f32 %v687, %v873
  %v875 = vpop.f32.mrf.mxu0
  %876 = vmatprep.mubr.f32.mxu0 0.0
  %877 = vmatmul.mubr.f32.gmra.mxu0 %v717
  %v878 = vpop.f32.mrf.mxu0
  %v879 = vadd.f32 %v687, %v878
  %v880 = vpop.f32.mrf.mxu0
  %881 = vmatprep.mubr.f32.mxu0 0.0
  %882 = vmatmul.mubr.f32.gmra.mxu0 %v720
  %v883 = vpop.f32.mrf.mxu0
  %v884 = vadd.f32 %v687, %v883
  %v885 = vpop.f32.mrf.mxu0
  %886 = vmatprep.mubr.f32.mxu0 0.0
  %887 = vmatmul.mubr.f32.gmra.mxu0 %v723
  %v888 = vpop.f32.mrf.mxu0
  %v889 = vadd.f32 %v687, %v888
  %v890 = vpop.f32.mrf.mxu0
  %891 = vmatprep.mubr.f32.mxu0 0.0
  %892 = vmatmul.mubr.f32.gmra.mxu0 %v726
  %v893 = vpop.f32.mrf.mxu0
  %v894 = vadd.f32 %v687, %v893
  %v895 = vpop.f32.mrf.mxu0
  %896 = vmatprep.mubr.f32.mxu0 0.0
  %897 = vmatmul.mubr.f32.gmra.mxu0 %v729
  %v898 = vpop.f32.mrf.mxu0
  %v899 = vadd.f32 %v687, %v898
  %v900 = vpop.f32.mrf.mxu0
  %901 = vmatprep.mubr.f32.mxu0 0.0
  %902 = vmatmul.mubr.f32.gmra.mxu0 %v732
  %v903 = vpop.f32.mrf.mxu0
  %v904 = vadd.f32 %v687, %v903
  %v905 = vpop.f32.mrf.mxu0
  %906 = vmatprep.mubr.f32.mxu0 0.0
  %907 = vmatmul.mubr.f32.gmra.mxu0 %v735
  %v908 = vpop.f32.mrf.mxu0
  %v909 = vadd.f32 %v687, %v908
  %v910 = vpop.f32.mrf.mxu0
  %911 = vmatprep.mubr.f32.mxu0 0.0
  %912 = vmatmul.mubr.f32.gmra.mxu0 %v738
  %v913 = vpop.f32.mrf.mxu0
  %v914 = vadd.f32 %v687, %v913
  %v915 = vpop.f32.mrf.mxu0
  %916 = vmatprep.mubr.f32.mxu0 0.0
  %917 = vmatmul.mubr.f32.gmra.mxu0 %v741
  %v918 = vpop.f32.mrf.mxu0
  %v919 = vadd.f32 %v687, %v918
  %v920 = vpop.f32.mrf.mxu0
  %921 = vmatprep.mubr.f32.mxu0 0.0
  %922 = vmatmul.mubr.f32.gmra.mxu0 %v744
  %v923 = vpop.f32.mrf.mxu0
  %v924 = vadd.f32 %v687, %v923
  %v925 = vpop.f32.mrf.mxu0
  %926 = vmatprep.mubr.f32.mxu0 0.0
  %927 = vmatmul.mubr.f32.gmra.mxu0 %v747
  %v928 = vpop.f32.mrf.mxu0
  %v929 = vadd.f32 %v687, %v928
  %v930 = vpop.f32.mrf.mxu0
  %931 = vmatprep.mubr.f32.mxu0 0.0
  %932 = vmatmul.mubr.f32.gmra.mxu0 %v750
  %v933 = vpop.f32.mrf.mxu0
  %v934 = vadd.f32 %v687, %v933
  %v935 = vpop.f32.mrf.mxu0
  %936 = vmatprep.mubr.f32.mxu0 0.0
  %937 = vmatmul.mubr.f32.gmra.mxu0 %v753
  %v938 = vpop.f32.mrf.mxu0
  %v939 = vadd.f32 %v687, %v938
  %v940 = vpop.f32.mrf.mxu0
  %941 = vmatprep.mubr.f32.mxu0 0.0
  %942 = vmatmul.mubr.f32.gmra.mxu0 %v756
  %v943 = vpop.f32.mrf.mxu0
  %v944 = vadd.f32 %v687, %v943
  %v945 = vpop.f32.mrf.mxu0
  %946 = vmatprep.mubr.f32.mxu0 0.0
  %947 = vmatmul.mubr.f32.gmra.mxu0 %v759
  %v948 = vpop.f32.mrf.mxu0
  %v949 = vadd.f32 %v687, %v948
  %v950 = vpop.f32.mrf.mxu0
  %951 = vmatprep.mubr.f32.mxu0 0.0
  %952 = vmatmul.mubr.f32.gmra.mxu0 %v762
  %v953 = vpop.f32.mrf.mxu0
  %v954 = vadd.f32 %v687, %v953
  %v955 = vpop.f32.mrf.mxu0
  %956 = vmatprep.mubr.f32.mxu0 0.0
  %957 = vmatmul.mubr.f32.gmra.mxu0 %v765
  %v958 = vpop.f32.mrf.mxu0
  %v959 = vadd.f32 %v687, %v958
  %v960 = vpop.f32.mrf.mxu0
  %961 = vdwg.mxu0
  %v962 = vmax.f32 %v834, 0.0
  %v963 = vmax.f32 %v839, 0.0
  %v964 = vmax.f32 %v844, 0.0
  %v965 = vmax.f32 %v849, 0.0
  %v966 = vmax.f32 %v854, 0.0
  %v967 = vmax.f32 %v859, 0.0
  %v968 = vmax.f32 %v864, 0.0
  %v969 = vmax.f32 %v869, 0.0
  %v970 = vmax.f32 %v874, 0.0
  %v971 = vmax.f32 %v879, 0.0
  %v972 = vmax.f32 %v884, 0.0
  %v973 = vmax.f32 %v889, 0.0
  %v974 = vmax.f32 %v894, 0.0
  %v975 = vmax.f32 %v899, 0.0
  %v976 = vmax.f32 %v904, 0.0
  %v977 = vmax.f32 %v909, 0.0
  %v978 = vmax.f32 %v914, 0.0
  %v979 = vmax.f32 %v919, 0.0
  %v980 = vmax.f32 %v924, 0.0
  %v981 = vmax.f32 %v929, 0.0
  %v982 = vmax.f32 %v934, 0.0
  %v983 = vmax.f32 %v939, 0.0
  %v984 = vmax.f32 %v944, 0.0
  %v985 = vmax.f32 %v949, 0.0
  %v986 = vmax.f32 %v954, 0.0
  %v987 = vmax.f32 %v959, 0.0
  %v988 = vld [vmem:[%s7] sm:$0xff]
  %v989 = vld [vmem:[%s7 + $0x8] sm:$0xff]
  %v990 = vld [vmem:[%s7 + $0x10] sm:$0xff]
  %v991 = vld [vmem:[%s7 + $0x18] sm:$0xff]
  %v992 = vld [vmem:[%s8] sm:$0x1]
  %v994 = vlaneseq
  %v995 = vshrl.u32 %v994, 7
  %v996 = vsub.s32 0, %v995
  %v997 = vrot.slane %v992, %v996
  %v1000 = vsel %vm378, %v962, 0
  %v1003 = vsel %vm378, %v963, 0
  %v1006 = vsel %vm378, %v964, 0
  %v1009 = vsel %vm378, %v965, 0
  %v1012 = vsel %vm378, %v966, 0
  %v1015 = vsel %vm378, %v967, 0
  %v1018 = vsel %vm378, %v968, 0
  %v1021 = vsel %vm378, %v969, 0
  %v1024 = vsel %vm378, %v970, 0
  %v1027 = vsel %vm378, %v971, 0
  %v1030 = vsel %vm378, %v972, 0
  %v1033 = vsel %vm378, %v973, 0
  %v1036 = vsel %vm378, %v974, 0
  %v1039 = vsel %vm378, %v975, 0
  %v1042 = vsel %vm378, %v976, 0
  %v1045 = vsel %vm378, %v977, 0
  %v1048 = vsel %vm378, %v978, 0
  %v1051 = vsel %vm378, %v979, 0
  %v1054 = vsel %vm378, %v980, 0
  %v1057 = vsel %vm378, %v981, 0
  %v1060 = vsel %vm378, %v982, 0
  %v1063 = vsel %vm378, %v983, 0
  %v1066 = vsel %vm378, %v984, 0
  %v1069 = vsel %vm378, %v985, 0
  %v1072 = vsel %vm378, %v986, 0
  %v1075 = vsel %vm378, %v987, 0
  %1077 = vmatprep.subr.mxu0 0.0
  %1078 = vmatpush1.msra.mxu0 0.0
  %1079 = vmatprep.subr.mxu0 0.0
  %1080 = vmatpush1.msra.mxu0 0.0
  %1081 = vmatprep.subr.mxu0 0.0
  %1082 = vmatpush1.msra.mxu0 0.0
  %1083 = vmatprep.subr.mxu0 0.0
  %1084 = vmatpush1.msra.mxu0 0.0
  %1085 = vmatprep.subr.mxu0 0.0
  %1086 = vmatpush1.msra.mxu0 0.0
  %1087 = vmatprep.subr.mxu0 0.0
  %1088 = vmatpush1.msra.mxu0 0.0
  %1089 = vmatprep.subr.mxu0 0.0
  %1090 = vmatpush1.msra.mxu0 0.0
  %1091 = vmatprep.subr.mxu0 0.0
  %1092 = vmatpush1.msra.mxu0 0.0
  %1093 = vmatprep.subr.mxu0 0.0
  %1094 = vmatpush1.msra.mxu0 0.0
  %1095 = vmatprep.subr.mxu0 0.0
  %1096 = vmatpush1.msra.mxu0 0.0
  %1097 = vmatprep.subr.mxu0 0.0
  %1098 = vmatpush1.msra.mxu0 0.0
  %1099 = vmatprep.subr.mxu0 0.0
  %1100 = vmatpush1.msra.mxu0 0.0
  %1101 = vmatprep.subr.mxu0 0.0
  %1102 = vmatpush1.msra.mxu0 %v991
  %1103 = vmatprep.subr.mxu0 0.0
  %1104 = vmatpush1.msra.mxu0 %v990
  %1105 = vmatprep.subr.mxu0 0.0
  %1106 = vmatpush1.msra.mxu0 %v989
  %1107 = vmatprep.subr.mxu0 0.0
  %1108 = vmatpush1.msra.mxu0 %v988
  %1109 = vmatprep.subr.mxu0 0.0
  %1110 = vmatpush2.msra.mxu0 0.0
  %1111 = vmatprep.subr.mxu0 0.0
  %1112 = vmatpush2.msra.mxu0 0.0
  %1113 = vmatprep.subr.mxu0 0.0
  %1114 = vmatpush2.msra.mxu0 0.0
  %1115 = vmatprep.subr.mxu0 0.0
  %1116 = vmatpush2.msra.mxu0 0.0
  %1117 = vmatprep.subr.mxu0 0.0
  %1118 = vmatpush2.msra.mxu0 0.0
  %1119 = vmatprep.subr.mxu0 0.0
  %1120 = vmatpush2.msra.mxu0 0.0
  %1121 = vmatprep.subr.mxu0 0.0
  %1122 = vmatpush2.msra.mxu0 0.0
  %1123 = vmatprep.subr.mxu0 0.0
  %1124 = vmatpush2.msra.mxu0 0.0
  %1125 = vmatprep.subr.mxu0 0.0
  %1126 = vmatpush2.msra.mxu0 0.0
  %1127 = vmatprep.subr.mxu0 0.0
  %1128 = vmatpush2.msra.mxu0 0.0
  %1129 = vmatprep.subr.mxu0 0.0
  %1130 = vmatpush2.msra.mxu0 0.0
  %1131 = vmatprep.subr.mxu0 0.0
  %1132 = vmatpush2.msra.mxu0 0.0
  %1133 = vmatprep.subr.mxu0 0.0
  %1134 = vmatpush2.msra.mxu0 0.0
  %1135 = vmatprep.subr.mxu0 0.0
  %1136 = vmatpush2.msra.mxu0 0.0
  %1137 = vmatprep.subr.mxu0 0.0
  %1138 = vmatpush2.msra.mxu0 0.0
  %1139 = vmatprep.subr.mxu0 0.0
  %1140 = vmatpush2.msra.mxu0 0.0
  %1141 = vmatprep.mubr.f32.mxu0 0.0
  %1142 = vmatmul.mubr.f32.gmra.mxu0 %v1000
  %v1143 = vpop.f32.mrf.mxu0
  %v1144 = vadd.f32 %v997, %v1143
  %v1145 = vpop.f32.mrf.mxu0
  %1146 = vmatprep.mubr.f32.mxu0 0.0
  %1147 = vmatmul.mubr.f32.gmra.mxu0 %v1003
  %v1148 = vpop.f32.mrf.mxu0
  %v1149 = vadd.f32 %v997, %v1148
  %v1150 = vpop.f32.mrf.mxu0
  %1151 = vmatprep.mubr.f32.mxu0 0.0
  %1152 = vmatmul.mubr.f32.gmra.mxu0 %v1006
  %v1153 = vpop.f32.mrf.mxu0
  %v1154 = vadd.f32 %v997, %v1153
  %v1155 = vpop.f32.mrf.mxu0
  %1156 = vmatprep.mubr.f32.mxu0 0.0
  %1157 = vmatmul.mubr.f32.gmra.mxu0 %v1009
  %v1158 = vpop.f32.mrf.mxu0
  %v1159 = vadd.f32 %v997, %v1158
  %v1160 = vpop.f32.mrf.mxu0
  %1161 = vmatprep.mubr.f32.mxu0 0.0
  %1162 = vmatmul.mubr.f32.gmra.mxu0 %v1012
  %v1163 = vpop.f32.mrf.mxu0
  %v1164 = vadd.f32 %v997, %v1163
  %v1165 = vpop.f32.mrf.mxu0
  %1166 = vmatprep.mubr.f32.mxu0 0.0
  %1167 = vmatmul.mubr.f32.gmra.mxu0 %v1015
  %v1168 = vpop.f32.mrf.mxu0
  %v1169 = vadd.f32 %v997, %v1168
  %v1170 = vpop.f32.mrf.mxu0
  %1171 = vmatprep.mubr.f32.mxu0 0.0
  %1172 = vmatmul.mubr.f32.gmra.mxu0 %v1018
  %v1173 = vpop.f32.mrf.mxu0
  %v1174 = vadd.f32 %v997, %v1173
  %v1175 = vpop.f32.mrf.mxu0
  %1176 = vmatprep.mubr.f32.mxu0 0.0
  %1177 = vmatmul.mubr.f32.gmra.mxu0 %v1021
  %v1178 = vpop.f32.mrf.mxu0
  %v1179 = vadd.f32 %v997, %v1178
  %v1180 = vpop.f32.mrf.mxu0
  %1181 = vmatprep.mubr.f32.mxu0 0.0
  %1182 = vmatmul.mubr.f32.gmra.mxu0 %v1024
  %v1183 = vpop.f32.mrf.mxu0
  %v1184 = vadd.f32 %v997, %v1183
  %v1185 = vpop.f32.mrf.mxu0
  %1186 = vmatprep.mubr.f32.mxu0 0.0
  %1187 = vmatmul.mubr.f32.gmra.mxu0 %v1027
  %v1188 = vpop.f32.mrf.mxu0
  %v1189 = vadd.f32 %v997, %v1188
  %v1190 = vpop.f32.mrf.mxu0
  %1191 = vmatprep.mubr.f32.mxu0 0.0
  %1192 = vmatmul.mubr.f32.gmra.mxu0 %v1030
  %v1193 = vpop.f32.mrf.mxu0
  %v1194 = vadd.f32 %v997, %v1193
  %v1195 = vpop.f32.mrf.mxu0
  %1196 = vmatprep.mubr.f32.mxu0 0.0
  %1197 = vmatmul.mubr.f32.gmra.mxu0 %v1033
  %v1198 = vpop.f32.mrf.mxu0
  %v1199 = vadd.f32 %v997, %v1198
  %v1200 = vpop.f32.mrf.mxu0
  %1201 = vmatprep.mubr.f32.mxu0 0.0
  %1202 = vmatmul.mubr.f32.gmra.mxu0 %v1036
  %v1203 = vpop.f32.mrf.mxu0
  %v1204 = vadd.f32 %v997, %v1203
  %v1205 = vpop.f32.mrf.mxu0
  %1206 = vmatprep.mubr.f32.mxu0 0.0
  %1207 = vmatmul.mubr.f32.gmra.mxu0 %v1039
  %v1208 = vpop.f32.mrf.mxu0
  %v1209 = vadd.f32 %v997, %v1208
  %v1210 = vpop.f32.mrf.mxu0
  %1211 = vmatprep.mubr.f32.mxu0 0.0
  %1212 = vmatmul.mubr.f32.gmra.mxu0 %v1042
  %v1213 = vpop.f32.mrf.mxu0
  %v1214 = vadd.f32 %v997, %v1213
  %v1215 = vpop.f32.mrf.mxu0
  %1216 = vmatprep.mubr.f32.mxu0 0.0
  %1217 = vmatmul.mubr.f32.gmra.mxu0 %v1045
  %v1218 = vpop.f32.mrf.mxu0
  %v1219 = vadd.f32 %v997, %v1218
  %v1220 = vpop.f32.mrf.mxu0
  %1221 = vmatprep.mubr.f32.mxu0 0.0
  %1222 = vmatmul.mubr.f32.gmra.mxu0 %v1048
  %v1223 = vpop.f32.mrf.mxu0
  %v1224 = vadd.f32 %v997, %v1223
  %v1225 = vpop.f32.mrf.mxu0
  %1226 = vmatprep.mubr.f32.mxu0 0.0
  %1227 = vmatmul.mubr.f32.gmra.mxu0 %v1051
  %v1228 = vpop.f32.mrf.mxu0
  %v1229 = vadd.f32 %v997, %v1228
  %v1230 = vpop.f32.mrf.mxu0
  %1231 = vmatprep.mubr.f32.mxu0 0.0
  %1232 = vmatmul.mubr.f32.gmra.mxu0 %v1054
  %v1233 = vpop.f32.mrf.mxu0
  %v1234 = vadd.f32 %v997, %v1233
  %v1235 = vpop.f32.mrf.mxu0
  %1236 = vmatprep.mubr.f32.mxu0 0.0
  %1237 = vmatmul.mubr.f32.gmra.mxu0 %v1057
  %v1238 = vpop.f32.mrf.mxu0
  %v1239 = vadd.f32 %v997, %v1238
  %v1240 = vpop.f32.mrf.mxu0
  %1241 = vmatprep.mubr.f32.mxu0 0.0
  %1242 = vmatmul.mubr.f32.gmra.mxu0 %v1060
  %v1243 = vpop.f32.mrf.mxu0
  %v1244 = vadd.f32 %v997, %v1243
  %v1245 = vpop.f32.mrf.mxu0
  %1246 = vmatprep.mubr.f32.mxu0 0.0
  %1247 = vmatmul.mubr.f32.gmra.mxu0 %v1063
  %v1248 = vpop.f32.mrf.mxu0
  %v1249 = vadd.f32 %v997, %v1248
  %v1250 = vpop.f32.mrf.mxu0
  %1251 = vmatprep.mubr.f32.mxu0 0.0
  %1252 = vmatmul.mubr.f32.gmra.mxu0 %v1066
  %v1253 = vpop.f32.mrf.mxu0
  %v1254 = vadd.f32 %v997, %v1253
  %v1255 = vpop.f32.mrf.mxu0
  %1256 = vmatprep.mubr.f32.mxu0 0.0
  %1257 = vmatmul.mubr.f32.gmra.mxu0 %v1069
  %v1258 = vpop.f32.mrf.mxu0
  %v1259 = vadd.f32 %v997, %v1258
  %v1260 = vpop.f32.mrf.mxu0
  %1261 = vmatprep.mubr.f32.mxu0 0.0
  %1262 = vmatmul.mubr.f32.gmra.mxu0 %v1072
  %v1263 = vpop.f32.mrf.mxu0
  %v1264 = vadd.f32 %v997, %v1263
  %v1265 = vpop.f32.mrf.mxu0
  %1266 = vmatprep.mubr.f32.mxu0 0.0
  %1267 = vmatmul.mubr.f32.gmra.mxu0 %v1075
  %v1268 = vpop.f32.mrf.mxu0
  %v1269 = vadd.f32 %v997, %v1268
  %v1270 = vpop.f32.mrf.mxu0
  %1271 = vdwg.mxu0
  %1272 = vst.msk [vmem:[%s9] sm:$0xff] %vm378, %v1144
  %1273 = vst.msk [vmem:[%s9 + $0x8] sm:$0xff] %vm378, %v1149
  %1274 = vst.msk [vmem:[%s9 + $0x10] sm:$0xff] %vm378, %v1154
  %1275 = vst.msk [vmem:[%s9 + $0x18] sm:$0xff] %vm378, %v1159
  %1276 = vst.msk [vmem:[%s9 + $0x20] sm:$0xff] %vm378, %v1164
  %1277 = vst.msk [vmem:[%s9 + $0x28] sm:$0xff] %vm378, %v1169
  %1278 = vst.msk [vmem:[%s9 + $0x30] sm:$0xff] %vm378, %v1174
  %1279 = vst.msk [vmem:[%s9 + $0x38] sm:$0xff] %vm378, %v1179
  %1280 = vst.msk [vmem:[%s9 + $0x40] sm:$0xff] %vm378, %v1184
  %1281 = vst.msk [vmem:[%s9 + $0x48] sm:$0xff] %vm378, %v1189
  %1282 = vst.msk [vmem:[%s9 + $0x50] sm:$0xff] %vm378, %v1194
  %1283 = vst.msk [vmem:[%s9 + $0x58] sm:$0xff] %vm378, %v1199
  %1284 = vst.msk [vmem:[%s9 + $0x60] sm:$0xff] %vm378, %v1204
  %1285 = vst.msk [vmem:[%s9 + $0x68] sm:$0xff] %vm378, %v1209
  %1286 = vst.msk [vmem:[%s9 + $0x70] sm:$0xff] %vm378, %v1214
  %1287 = vst.msk [vmem:[%s9 + $0x78] sm:$0xff] %vm378, %v1219
  %1288 = vst.msk [vmem:[%s9 + $0x80] sm:$0xff] %vm378, %v1224
  %1289 = vst.msk [vmem:[%s9 + $0x88] sm:$0xff] %vm378, %v1229
  %1290 = vst.msk [vmem:[%s9 + $0x90] sm:$0xff] %vm378, %v1234
  %1291 = vst.msk [vmem:[%s9 + $0x98] sm:$0xff] %vm378, %v1239
  %1292 = vst.msk [vmem:[%s9 + $0xa0] sm:$0xff] %vm378, %v1244
  %1293 = vst.msk [vmem:[%s9 + $0xa8] sm:$0xff] %vm378, %v1249
  %1294 = vst.msk [vmem:[%s9 + $0xb0] sm:$0xff] %vm378, %v1254
  %1295 = vst.msk [vmem:[%s9 + $0xb8] sm:$0xff] %vm378, %v1259
  %1296 = vst.msk [vmem:[%s9 + $0xc0] sm:$0xff] %vm378, %v1264
  %1297 = vst.msk [vmem:[%s9 + $0xc8] sm:$0xff] %vm378, %v1269
  // Predicated region
  $region38: #{tpu_custom_call.1} parent=0 // pred_check
    _
  $region39: #{tpu_custom_call.1} parent=0 // pred_check_branch
    %1299 = sbr.rel (0) target = $region41
  $region40: #{tpu_custom_call.1} parent=0 // pred_region
    _
  $region41: #{tpu_custom_call.1} parent=0 // pred_fallthru
    _
  // Predicated region
  $region42: #{tpu_custom_call.1} parent=0 // pred_check
    _
  $region43: #{tpu_custom_call.1} parent=0 // pred_check_branch
    %1301 = sbr.rel (0) target = $region45
  $region44: #{tpu_custom_call.1} parent=0 // pred_region
    _
  $region45: #{tpu_custom_call.1} parent=0 // pred_fallthru
    _

</llo_original>
